<compile_context>
chip_gen: v5e
topology: v5e:2x2
jax: 0.10.0
libtpu: 0.0.40
codegen_flags: <defaults>
</compile_context>

<pallas_src>
import functools

import jax
import jax.numpy as jnp
from jax.experimental import pallas as pl
from jax.experimental.pallas import tpu as pltpu


def _round_up(x, m):
    return ((x + m - 1) // m) * m


def mlp_actor_kernel(x_ref, w1_ref, b1_ref, w2_ref, b2_ref, w3_ref, b3_ref, out_ref):
    # Layer 1: Linear (time feature folded into b1) + ReLU.  f32 throughout.
    h = jnp.dot(x_ref[...], w1_ref[...], preferred_element_type=jnp.float32)
    h = jnp.maximum(h + b1_ref[...], 0.0)
    # Layer 2: Linear + ReLU.
    h = jnp.dot(h, w2_ref[...], preferred_element_type=jnp.float32)
    h = jnp.maximum(h + b2_ref[...], 0.0)
    # Output layer: Linear + Tanh, stored at the exact (TM, act_dim) width.
    y = jnp.dot(h, w3_ref[...], preferred_element_type=jnp.float32)
    out_ref[...] = jnp.tanh(y + b3_ref[...]).astype(out_ref.dtype)


def prepare_actor_params(params):
    """One-time parameter prep hoisted out of the hot forward path."""
    return {
        "w1_time": params["w1"][0:1, :],   # row 0 of w1 == time feature
        "w1_obs": params["w1"][1:, :],     # [obs_dim, h1]
        "b1": params["b1"],
        "w2": params["w2"], "b2": params["b2"],
        "w3": params["w3"], "b3": params["b3"],
    }


def _pick_tile(batch):
    # Per-grid-step overhead (~0.35 us) dominates the tiny per-row DMA bytes
    # (obs 64 B/row f32 + out 16 B/row f32), so use large batch tiles.  For
    # large B, cap TM so num_tiles >= 2: keeps both v7x TensorCores fed
    # (v5e/v6e have 1 TC and are unaffected).  VMEM stays tiny either way.
    if batch <= 1024:
        return _round_up(batch, 8)
    return min(4096, _round_up(pl.cdiv(batch, 2), 256))


@functools.partial(jax.jit, static_argnames=("scale",))
def mlp_actor_forward(time, obs, prepared, scale=1.0):
    """Replicates MLPActor.forward.

    time:     scalar float (python or traced), constant across the batch.
    obs:      [B, obs_dim] float32
    prepared: output of prepare_actor_params (weights [in, out], biases [1, out]).
    """
    w1_obs, w1_time = prepared["w1_obs"], prepared["w1_time"]
    b1 = prepared["b1"]
    w2, b2 = prepared["w2"], prepared["b2"]
    w3, b3 = prepared["w3"], prepared["b3"]

    B, obs_dim = obs.shape
    h1 = w1_obs.shape[1]
    h2 = w2.shape[1]
    act_dim = w3.shape[1]

    # Fold the constant time feature into the first-layer bias (f32):
    #   concat([t, obs]) @ w1 + b1 == obs @ w1[1:] + (b1 + t * w1[0:1])
    # TODO(synk): this assumes `time` is a scalar shared by the whole batch
    # (true for this module); a per-sample time vector would need the concat.
    t = jnp.asarray(time, dtype=jnp.float32) / scale
    b1_eff = b1 + t * w1_time            # [1, h1]

    TM = _pick_tile(B)
    num_tiles = pl.cdiv(B, TM)           # ragged edge block handled by Pallas

    def resident(arr):
        return pl.BlockSpec(arr.shape, lambda i: (0, 0))

    flops = 2 * B * (obs_dim * h1 + h1 * h2 + h2 * act_dim)
    bytes_accessed = 4 * (
        B * obs_dim                                   # obs tiles (f32)
        + obs_dim * h1 + h1 * h2 + h2 * act_dim       # weights (f32)
        + h1 + h2 + act_dim                           # biases (f32)
        + B * act_dim                                 # output (f32)
    )

    out = pl.pallas_call(
        mlp_actor_kernel,
        out_shape=jax.ShapeDtypeStruct((B, act_dim), jnp.float32),
        grid=(num_tiles,),
        in_specs=[
            pl.BlockSpec((TM, obs_dim), lambda i: (i, 0)),   # obs batch tile
            resident(w1_obs), resident(b1_eff),
            resident(w2), resident(b2),
            resident(w3), resident(b3),
        ],
        out_specs=pl.BlockSpec((TM, act_dim), lambda i: (i, 0)),
        compiler_params=pltpu.CompilerParams(
            dimension_semantics=("parallel",),
        ),
        cost_estimate=pl.CostEstimate(
            flops=flops,
            transcendentals=B * act_dim,
            bytes_accessed=bytes_accessed,
        ),
    )(obs, w1_obs, b1_eff, w2, b2, w3, b3)

    return out


def mlp_actor_reference(time, obs, params, scale=1.0):
    """Pure-JAX reference matching the PyTorch module (f32 end to end)."""
    B = obs.shape[0]
    time_expand = jnp.full((B, 1), time / scale, dtype=obs.dtype)
    x = jnp.concatenate([time_expand, obs], axis=-1)
    h = jnp.maximum(x @ params["w1"] + params["b1"], 0.0)
    h = jnp.maximum(h @ params["w2"] + params["b2"], 0.0)
    return jnp.tanh(h @ params["w3"] + params["b3"])


def init_params(key, obs_dim, act_dim, hidden_sizes):
    """Deterministic parameter init (uniform, roughly nn.Linear's scale)."""
    sizes = [obs_dim + 1] + list(hidden_sizes) + [act_dim]
    params = {}
    for j in range(len(sizes) - 1):
        fan_in, fan_out = sizes[j], sizes[j + 1]
        key, kw, kb = jax.random.split(key, 3)
        bound = 1.0 / jnp.sqrt(float(fan_in))
        # stored as [in, out] (transpose of PyTorch's [out, in])
        params[f"w{j+1}"] = jax.random.uniform(
            kw, (fan_in, fan_out), jnp.float32, -bound, bound)
        params[f"b{j+1}"] = jax.random.uniform(
            kb, (1, fan_out), jnp.float32, -bound, bound)
    return params


if __name__ == "__main__":
    obs_dim = 16
    act_dim = 4
    hidden_sizes = (32, 32)
    batch = 8

    key = jax.random.PRNGKey(0)
    key, k_obs = jax.random.split(key)
    obs = jax.random.normal(k_obs, (batch, obs_dim), dtype=jnp.float32)
    params = init_params(key, obs_dim, act_dim, hidden_sizes)
    prepared = prepare_actor_params(params)   # one-time prep, outside hot path

    time = 3.0
    scale = 10.0

    act = mlp_actor_forward(time, obs, prepared, scale=scale)
    jax.block_until_ready(act)
    assert act.shape == (batch, act_dim)

    # Full-f32 datapath -> tight tolerance vs the pure-JAX reference.
    ref = mlp_actor_reference(time, obs, params, scale=scale)
    assert jnp.max(jnp.abs(act - ref)) < 1e-3

    print("KERNEL_OK")
</pallas_src>

<mosaic_0001>
module attributes {stable_mosaic.version = 11 : i64} {
  func.func @mlp_actor_kernel(%arg0: i32, %arg1: memref<8x16xf32, #tpu.memory_space<vmem>>, %arg2: memref<16x32xf32, #tpu.memory_space<vmem>>, %arg3: memref<1x32xf32, #tpu.memory_space<vmem>>, %arg4: memref<32x32xf32, #tpu.memory_space<vmem>>, %arg5: memref<1x32xf32, #tpu.memory_space<vmem>>, %arg6: memref<32x4xf32, #tpu.memory_space<vmem>>, %arg7: memref<1x4xf32, #tpu.memory_space<vmem>>, %arg8: memref<8x4xf32, #tpu.memory_space<vmem>>) attributes {dimension_semantics = [#tpu.dimension_semantics<parallel>], iteration_bounds = array<i64: 1>, scalar_prefetch = 0 : i64, scratch_operands = 0 : i64, tpu.core_type = #tpu.core_type<tc>, window_params = [{transform_indices = @transform_0, window_bounds = array<i64: 8, 16>}, {pipeline_mode = #tpu.pipeline_mode<synchronous>, transform_indices = @transform_1, window_bounds = array<i64: 16, 32>}, {pipeline_mode = #tpu.pipeline_mode<synchronous>, transform_indices = @transform_2, window_bounds = array<i64: 1, 32>}, {pipeline_mode = #tpu.pipeline_mode<synchronous>, transform_indices = @transform_3, window_bounds = array<i64: 32, 32>}, {pipeline_mode = #tpu.pipeline_mode<synchronous>, transform_indices = @transform_4, window_bounds = array<i64: 1, 32>}, {pipeline_mode = #tpu.pipeline_mode<synchronous>, transform_indices = @transform_5, window_bounds = array<i64: 32, 4>}, {pipeline_mode = #tpu.pipeline_mode<synchronous>, transform_indices = @transform_6, window_bounds = array<i64: 1, 4>}, {transform_indices = @transform_7, window_bounds = array<i64: 8, 4>}]} {
    %c0 = arith.constant 0 : index
    %c0_0 = arith.constant 0 : index
    %0 = vector.load %arg1[%c0, %c0_0] : memref<8x16xf32, #tpu.memory_space<vmem>>, vector<8x16xf32>
    %c0_1 = arith.constant 0 : index
    %c0_2 = arith.constant 0 : index
    %1 = vector.load %arg2[%c0_1, %c0_2] : memref<16x32xf32, #tpu.memory_space<vmem>>, vector<16x32xf32>
    %cst = arith.constant dense<0.000000e+00> : vector<8x32xf32>
    %2 = tpu.matmul %0, %1, %cst {dimension_numbers = #tpu.dot_dimension_numbers<[1], [0], [0], [1], [0, 0, 1, 1], [], []>} : vector<8x16xf32>, vector<16x32xf32>, vector<8x32xf32> -> vector<8x32xf32>
    %c0_3 = arith.constant 0 : index
    %c0_4 = arith.constant 0 : index
    %3 = vector.load %arg3[%c0_3, %c0_4] : memref<1x32xf32, #tpu.memory_space<vmem>>, vector<1x32xf32>
    %4 = vector.broadcast %3 : vector<1x32xf32> to vector<8x32xf32>
    %5 = arith.addf %2, %4 : vector<8x32xf32>
    %cst_5 = arith.constant 0.000000e+00 : f32
    %6 = vector.broadcast %cst_5 : f32 to vector<8x32xf32>
    %7 = arith.maximumf %5, %6 : vector<8x32xf32>
    %c0_6 = arith.constant 0 : index
    %c0_7 = arith.constant 0 : index
    %8 = vector.load %arg4[%c0_6, %c0_7] : memref<32x32xf32, #tpu.memory_space<vmem>>, vector<32x32xf32>
    %cst_8 = arith.constant dense<0.000000e+00> : vector<8x32xf32>
    %9 = tpu.matmul %7, %8, %cst_8 {dimension_numbers = #tpu.dot_dimension_numbers<[1], [0], [0], [1], [0, 0, 1, 1], [], []>} : vector<8x32xf32>, vector<32x32xf32>, vector<8x32xf32> -> vector<8x32xf32>
    %c0_9 = arith.constant 0 : index
    %c0_10 = arith.constant 0 : index
    %10 = vector.load %arg5[%c0_9, %c0_10] : memref<1x32xf32, #tpu.memory_space<vmem>>, vector<1x32xf32>
    %11 = vector.broadcast %10 : vector<1x32xf32> to vector<8x32xf32>
    %12 = arith.addf %9, %11 : vector<8x32xf32>
    %cst_11 = arith.constant 0.000000e+00 : f32
    %13 = vector.broadcast %cst_11 : f32 to vector<8x32xf32>
    %14 = arith.maximumf %12, %13 : vector<8x32xf32>
    %c0_12 = arith.constant 0 : index
    %c0_13 = arith.constant 0 : index
    %15 = vector.load %arg6[%c0_12, %c0_13] : memref<32x4xf32, #tpu.memory_space<vmem>>, vector<32x4xf32>
    %cst_14 = arith.constant dense<0.000000e+00> : vector<8x4xf32>
    %16 = tpu.matmul %14, %15, %cst_14 {dimension_numbers = #tpu.dot_dimension_numbers<[1], [0], [0], [1], [0, 0, 1, 1], [], []>} : vector<8x32xf32>, vector<32x4xf32>, vector<8x4xf32> -> vector<8x4xf32>
    %c0_15 = arith.constant 0 : index
    %c0_16 = arith.constant 0 : index
    %17 = vector.load %arg7[%c0_15, %c0_16] : memref<1x4xf32, #tpu.memory_space<vmem>>, vector<1x4xf32>
    %18 = vector.broadcast %17 : vector<1x4xf32> to vector<8x4xf32>
    %19 = arith.addf %16, %18 : vector<8x4xf32>
    %20 = math.tanh %19 : vector<8x4xf32>
    %c0_17 = arith.constant 0 : index
    %c0_18 = arith.constant 0 : index
    %21 = vector.load %arg8[%c0_17, %c0_18] : memref<8x4xf32, #tpu.memory_space<vmem>>, vector<8x4xf32>
    tpu.vector_store %arg8[%c0_17, %c0_18], %20 {strides = array<i32>} : memref<8x4xf32, #tpu.memory_space<vmem>>, vector<8x4xf32>,
    return
  }
  func.func @transform_0(%arg0: i32) -> (i32, i32) {
    %c0_i32 = arith.constant 0 : i32
    %c0_i32_0 = arith.constant 0 : i32
    return %arg0, %c0_i32 : i32, i32
  }
  func.func @transform_1(%arg0: i32) -> (i32, i32) {
    %c0_i32 = arith.constant 0 : i32
    %c0_i32_0 = arith.constant 0 : i32
    %c0_i32_1 = arith.constant 0 : i32
    return %c0_i32, %c0_i32_0 : i32, i32
  }
  func.func @transform_2(%arg0: i32) -> (i32, i32) {
    %c0_i32 = arith.constant 0 : i32
    %c0_i32_0 = arith.constant 0 : i32
    %c0_i32_1 = arith.constant 0 : i32
    return %c0_i32, %c0_i32_0 : i32, i32
  }
  func.func @transform_3(%arg0: i32) -> (i32, i32) {
    %c0_i32 = arith.constant 0 : i32
    %c0_i32_0 = arith.constant 0 : i32
    %c0_i32_1 = arith.constant 0 : i32
    return %c0_i32, %c0_i32_0 : i32, i32
  }
  func.func @transform_4(%arg0: i32) -> (i32, i32) {
    %c0_i32 = arith.constant 0 : i32
    %c0_i32_0 = arith.constant 0 : i32
    %c0_i32_1 = arith.constant 0 : i32
    return %c0_i32, %c0_i32_0 : i32, i32
  }
  func.func @transform_5(%arg0: i32) -> (i32, i32) {
    %c0_i32 = arith.constant 0 : i32
    %c0_i32_0 = arith.constant 0 : i32
    %c0_i32_1 = arith.constant 0 : i32
    return %c0_i32, %c0_i32_0 : i32, i32
  }
  func.func @transform_6(%arg0: i32) -> (i32, i32) {
    %c0_i32 = arith.constant 0 : i32
    %c0_i32_0 = arith.constant 0 : i32
    %c0_i32_1 = arith.constant 0 : i32
    return %c0_i32, %c0_i32_0 : i32, i32
  }
  func.func @transform_7(%arg0: i32) -> (i32, i32) {
    %c0_i32 = arith.constant 0 : i32
    %c0_i32_0 = arith.constant 0 : i32
    return %arg0, %c0_i32 : i32, i32
  }
}

</mosaic_0001>

<llo_original>
// kernel: mlp_actor_forward.1
$region0: #{mlp_actor_forward.1}
  #allocation0 [shape = 'u32[]', space=smem, size = 0x4, offset = 0x4, fixed_abs, tag = 'smem constant byte address 0x4 - core index']
  #allocation1 [shape = 'u32[72,128]{1,0:T(1,128)}', space=vmem, size = 0x9000, scoped, tag = 'internal scratch']
  %s0 = inlined_call_operand.hbm [shape: f32[8,16], index: 0, kind: input, shape index: {}]
  %s1 = inlined_call_operand.vmem [shape: f32[16,32], index: 1, kind: input, shape index: {}]
  %s2 = inlined_call_operand.vmem [shape: f32[1,32], index: 2, kind: input, shape index: {}]
  %s3 = inlined_call_operand.vmem [shape: f32[32,32], index: 3, kind: input, shape index: {}]
  %s4 = inlined_call_operand.vmem [shape: f32[1,32], index: 4, kind: input, shape index: {}]
  %s5 = inlined_call_operand.vmem [shape: f32[32,4], index: 5, kind: input, shape index: {}]
  %s6 = inlined_call_operand.vmem [shape: f32[1,4], index: 6, kind: input, shape index: {}]
  %s7 = inlined_call_operand.vmem [shape: f32[8,4], index: 7, kind: output, shape index: {}]
  %s8 = sld [smem:[#allocation0]]
  $region42: #{mlp_actor_forward.1} parent=0
    _
  %s10 = ssub.s32 1, %s8
  %s11 = scalar_select 0, %s10, %s8
  $region1: #{mlp_actor_forward.1} parent=0
    #allocation2 [shape = 'u8[4096]{0}', space=vmem, size = 0x1000, scoped, tag = 'input window, operand 0, single buffered']
    #allocation3 [shape = 's32[1]{0}', space=sflag, size = 0x4, scoped, tag = 'scoped memory for mlp_actor_forward.1']
    %12 = vsyncpa [#allocation3], 0
    // Predicated region
    $region2: #{mlp_actor_forward.1} parent=1 // pred_check
      _
    $region3: #{mlp_actor_forward.1} parent=1 // pred_check_branch
      %14 = sbr.rel (0) target = $region5
    $region4: #{mlp_actor_forward.1} parent=1 // pred_region
      %16 = vsyncadd [#allocation3], 0
      %s18 = sshll.u32 %s0, 4
      %s19 = int_to_ptr.hbm [resolvable:$true] %s18
      %s20 = sshll.u32 [#allocation2], 4
      %s21 = int_to_ptr.vmem [resolvable:$true] %s20
      %23 = dma.hbm_to_vmem [thread:$0]  %s19, 128, %s21, [#allocation3]
    $region5: #{mlp_actor_forward.1} parent=1 // pred_fallthru
      _
    // Predicated region
    $region6: #{mlp_actor_forward.1} parent=1 // pred_check
      _
    $region7: #{mlp_actor_forward.1} parent=1 // pred_check_branch
      %25 = sbr.rel (0) target = $region9
    $region8: #{mlp_actor_forward.1} parent=1 // pred_region
      _
    $region9: #{mlp_actor_forward.1} parent=1 // pred_fallthru
      _
    // Predicated region
    $region10: #{mlp_actor_forward.1} parent=1 // pred_check
      _
    $region11: #{mlp_actor_forward.1} parent=1 // pred_check_branch
      %27 = sbr.rel (0) target = $region13
    $region12: #{mlp_actor_forward.1} parent=1 // pred_region
      _
    $region13: #{mlp_actor_forward.1} parent=1 // pred_fallthru
      _
    // Predicated region
    $region14: #{mlp_actor_forward.1} parent=1 // pred_check
      _
    $region15: #{mlp_actor_forward.1} parent=1 // pred_check_branch
      %29 = sbr.rel (0) target = $region17
    $region16: #{mlp_actor_forward.1} parent=1 // pred_region
      _
    $region17: #{mlp_actor_forward.1} parent=1 // pred_fallthru
      _
    // Predicated region
    $region18: #{mlp_actor_forward.1} parent=1 // pred_check
      _
    $region19: #{mlp_actor_forward.1} parent=1 // pred_check_branch
      %31 = sbr.rel (0) target = $region21
    $region20: #{mlp_actor_forward.1} parent=1 // pred_region
      _
    $region21: #{mlp_actor_forward.1} parent=1 // pred_fallthru
      _
    // Predicated region
    $region22: #{mlp_actor_forward.1} parent=1 // pred_check
      _
    $region23: #{mlp_actor_forward.1} parent=1 // pred_check_branch
      %33 = sbr.rel (0) target = $region25
    $region24: #{mlp_actor_forward.1} parent=1 // pred_region
      _
    $region25: #{mlp_actor_forward.1} parent=1 // pred_fallthru
      _
    // Predicated region
    $region26: #{mlp_actor_forward.1} parent=1 // pred_check
      _
    $region27: #{mlp_actor_forward.1} parent=1 // pred_check_branch
      %35 = sbr.rel (0) target = $region29
    $region28: #{mlp_actor_forward.1} parent=1 // pred_region
      _
    $region29: #{mlp_actor_forward.1} parent=1 // pred_fallthru
      _
    // Predicated region
    $region30: #{mlp_actor_forward.1} parent=1 // pred_check
      _
    $region31: #{mlp_actor_forward.1} parent=1 // pred_check_branch
      %37 = sbr.rel (0) target = $region33
    $region32: #{mlp_actor_forward.1} parent=1 // pred_region
      %39 = dma.done [#allocation3], 128
    $region33: #{mlp_actor_forward.1} parent=1 // pred_fallthru
      _
    %v40 = vld [vmem:[#allocation2] sm:$0xff]
    %v41 = vld [vmem:[%s1] sm:$0xff]
    %v42 = vld [vmem:[%s1 + $0x8] sm:$0xff]
    %v43 = vld [vmem:[%s2] sm:$0x1]
    %v45 = vperm.slane %v43, 0
    %vm47 = vcmask 130048
    %v49 = vsel %vm47, %v40, 0
    %51 = vmatpush.msra.mxu0 0.0
    %52 = vmatpush.msra.mxu0 0.0
    %53 = vmatpush.msra.mxu0 0.0
    %54 = vmatpush.msra.mxu0 0.0
    %55 = vmatpush.msra.mxu0 0.0
    %56 = vmatpush.msra.mxu0 0.0
    %57 = vmatpush.msra.mxu0 0.0
    %58 = vmatpush.msra.mxu0 0.0
    %59 = vmatpush.msra.mxu0 0.0
    %60 = vmatpush.msra.mxu0 0.0
    %61 = vmatpush.msra.mxu0 0.0
    %62 = vmatpush.msra.mxu0 0.0
    %63 = vmatpush.msra.mxu0 0.0
    %64 = vmatpush.msra.mxu0 0.0
    %65 = vmatpush.msra.mxu0 %v42
    %66 = vmatpush.msra.mxu0 %v41
    %67 = vmatmul.f32.gmra.mxu0 %v49
    %v68 = vpop.f32.mrf.mxu0
    %v69 = vadd.f32 %v45, %v68
    %70 = vdwg.mxu0
    %v71 = vmax.f32 %v69, 0.0
    %v72 = vld [vmem:[%s3] sm:$0xff]
    %v73 = vld [vmem:[%s3 + $0x8] sm:$0xff]
    %v74 = vld [vmem:[%s3 + $0x10] sm:$0xff]
    %v75 = vld [vmem:[%s3 + $0x18] sm:$0xff]
    %v76 = vld [vmem:[%s4] sm:$0x1]
    %v78 = vperm.slane %v76, 0
    %vm80 = vcmask 261120
    %v82 = vsel %vm80, %v71, 0
    %84 = vmatpush.msra.mxu0 0.0
    %85 = vmatpush.msra.mxu0 0.0
    %86 = vmatpush.msra.mxu0 0.0
    %87 = vmatpush.msra.mxu0 0.0
    %88 = vmatpush.msra.mxu0 0.0
    %89 = vmatpush.msra.mxu0 0.0
    %90 = vmatpush.msra.mxu0 0.0
    %91 = vmatpush.msra.mxu0 0.0
    %92 = vmatpush.msra.mxu0 0.0
    %93 = vmatpush.msra.mxu0 0.0
    %94 = vmatpush.msra.mxu0 0.0
    %95 = vmatpush.msra.mxu0 0.0
    %96 = vmatpush.msra.mxu0 %v75
    %97 = vmatpush.msra.mxu0 %v74
    %98 = vmatpush.msra.mxu0 %v73
    %99 = vmatpush.msra.mxu0 %v72
    %100 = vmatmul.f32.gmra.mxu0 %v82
    %v101 = vpop.f32.mrf.mxu0
    %v102 = vadd.f32 %v78, %v101
    %103 = vdwg.mxu0
    %v104 = vmax.f32 %v102, 0.0
    %v105 = vld [vmem:[%s5] sm:$0xff]
    %v106 = vld [vmem:[%s5 + $0x8] sm:$0xff]
    %v107 = vld [vmem:[%s5 + $0x10] sm:$0xff]
    %v108 = vld [vmem:[%s5 + $0x18] sm:$0xff]
    %v109 = vld [vmem:[%s6] sm:$0x1]
    %v111 = vperm.slane %v109, 0
    %v114 = vsel %vm80, %v104, 0
    %116 = vmatpush.msra.mxu0 0.0
    %117 = vmatpush.msra.mxu0 0.0
    %118 = vmatpush.msra.mxu0 0.0
    %119 = vmatpush.msra.mxu0 0.0
    %120 = vmatpush.msra.mxu0 0.0
    %121 = vmatpush.msra.mxu0 0.0
    %122 = vmatpush.msra.mxu0 0.0
    %123 = vmatpush.msra.mxu0 0.0
    %124 = vmatpush.msra.mxu0 0.0
    %125 = vmatpush.msra.mxu0 0.0
    %126 = vmatpush.msra.mxu0 0.0
    %127 = vmatpush.msra.mxu0 0.0
    %128 = vmatpush.msra.mxu0 %v108
    %129 = vmatpush.msra.mxu0 %v107
    %130 = vmatpush.msra.mxu0 %v106
    %131 = vmatpush.msra.mxu0 %v105
    %132 = vmatmul.f32.gmra.mxu0 %v114
    %v133 = vpop.f32.mrf.mxu0
    %v134 = vadd.f32 %v111, %v133
    %135 = vdwg.mxu0
    %v136 = vtanh.pop %v134
    %vm137 = vcmask 31744
    %138 = vst.msk [vmem:[%s7] sm:$0xff] %vm137, %v136
    // Predicated region
    $region34: #{mlp_actor_forward.1} parent=1 // pred_check
      _
    $region35: #{mlp_actor_forward.1} parent=1 // pred_check_branch
      %140 = sbr.rel (0) target = $region37
    $region36: #{mlp_actor_forward.1} parent=1 // pred_region
      _
    $region37: #{mlp_actor_forward.1} parent=1 // pred_fallthru
      _
    // Predicated region
    $region38: #{mlp_actor_forward.1} parent=1 // pred_check
      _
    $region39: #{mlp_actor_forward.1} parent=1 // pred_check_branch
      %142 = sbr.rel (0) target = $region41
    $region40: #{mlp_actor_forward.1} parent=1 // pred_region
      _
    $region41: #{mlp_actor_forward.1} parent=1 // pred_fallthru
      _
    %143 = vsyncpa [#allocation3], 1

</llo_original>
